<compile_context>
chip_gen: v7x
topology: tpu7x:2x2x1
jax: 0.10.0
libtpu: 0.0.40
codegen_flags: <defaults>
</compile_context>

<pallas_src>
import math

import jax
import jax.numpy as jnp
from jax import lax
from jax.experimental import pallas as pl
from jax.experimental.pallas import tpu as pltpu

LANE = 128
MAX_TILE_M = 8192                 # (8192, 128) f32 = 4 MiB per input block
EPS = 1e-7
VMEM_LIMIT_BYTES = 32 * 1024 * 1024   # fits the big tiles on v5e/v6e/v7x


def _round_up(x, m):
    return ((x + m - 1) // m) * m


def _num_tensorcores():
    """Best effort: 2 on v7x-class devices (2 TensorCores/device), else 1."""
    try:
        kind = jax.devices()[0].device_kind.lower()
    except Exception:
        return 1
    return 2 if "v7" in kind else 1


def _make_weather_loss_kernel(alpha, beta, tile_m, inner, m_valid):
    """Kernel over a 2-axis grid (part, step).  m_valid = number of valid rows."""
    alpha = float(alpha)
    beta = float(beta)
    beta_is_one = (beta == 1.0)
    log_st_const = math.log(0.5 + EPS)   # log(st + eps) when beta == 1 (st == 0.5)
    sub = tile_m // 8

    def kernel(pred_ref, tgt_ref, out_ref, acc_ref):
        c = pl.program_id(0)              # part (CORE_PARALLEL axis on v7x)
        i = pl.program_id(1)              # reduction step ("arbitrary")

        @pl.when(i == 0)
        def _():
            acc_ref[...] = jnp.zeros_like(acc_ref)

        p = pred_ref[...].astype(jnp.float32)
        t = tgt_ref[...].astype(jnp.float32)

        # Logs shared between BCE and KL (EUP work minimized).
        lp = jnp.log(p + EPS)             # log(pred + eps)
        lq = jnp.log(1.0 - p + EPS)       # log(1 - pred + eps)

        w = jnp.where(t > 0.5, jnp.float32(alpha), jnp.float32(1.0))

        if beta_is_one:
            # Smoothed target is the constant 0.5 -> its logs fold at compile time.
            bce = -0.5 * (lp + lq)
            kl = p * lp + (1.0 - p) * lq - jnp.float32(log_st_const)
        else:
            st = t * (1.0 - beta) + 0.5 * beta
            lst = jnp.log(st + EPS)
            lsq = jnp.log(1.0 - st + EPS)
            bce = -(st * lp + (1.0 - st) * lq)
            # Log-difference rewrite of pred/(st+eps): reuses lp/lq, no EUP division.
            kl = p * (lp - lst) + (1.0 - p) * (lq - lsq)

        per = w * bce + 0.1 * kl          # (tile_m, LANE), fused into one accumulator

        tidx = c * inner + i              # logical tile number
        row_start = tidx * tile_m
        is_interior = (row_start + tile_m) <= m_valid

        @pl.when(is_interior)
        def _():
            # Mask-free fast path: fold tile into the (8, LANE) accumulator.
            acc_ref[...] += per.reshape(sub, 8, LANE).sum(axis=0)

        @pl.when(jnp.logical_not(is_interior))
        def _():
            # Edge (or fully out-of-range) tile: zero out rows beyond the valid data.
            row = row_start + lax.broadcasted_iota(jnp.int32, (tile_m, LANE), 0)
            masked = jnp.where(row < m_valid, per, jnp.float32(0.0))
            acc_ref[...] += masked.reshape(sub, 8, LANE).sum(axis=0)

        @pl.when(i == pl.num_programs(1) - 1)
        def _():
            # One cross-sublane reduction per part in the epilogue; write a
            # lane-dense (8, 128) block with the partial sums in row 0.
            total = jnp.sum(acc_ref[...], axis=0, keepdims=True)   # (1, LANE)
            ridx = lax.broadcasted_iota(jnp.int32, (8, LANE), 0)
            out_ref[...] = jnp.where(ridx == 0, total, jnp.float32(0.0))

    return kernel


def _build_call(m, tile_m, num_parts, alpha, beta):
    total_tiles = -(-m // tile_m)
    inner = -(-total_tiles // num_parts)
    kernel = _make_weather_loss_kernel(alpha, beta, tile_m, inner, m)

    if num_parts * inner == total_tiles:
        def idx_map(c, i):
            return (c * inner + i, 0)
    else:
        # Odd tile count split across 2 parts: clamp the trailing duplicate block
        # (its contribution is fully masked out in the kernel).
        def idx_map(c, i):
            return (jnp.minimum(c * inner + i, total_tiles - 1), 0)

    if num_parts == 2:
        dims = (pltpu.CORE_PARALLEL, pltpu.ARBITRARY)   # real 2-TC split on v7x
    else:
        dims = ("arbitrary", "arbitrary")

    return pl.pallas_call(
        kernel,
        out_shape=jax.ShapeDtypeStruct((num_parts * 8, LANE), jnp.float32),
        grid_spec=pltpu.PrefetchScalarGridSpec(
            num_scalar_prefetch=0,
            grid=(num_parts, inner),
            in_specs=[
                pl.BlockSpec((tile_m, LANE), idx_map),
                pl.BlockSpec((tile_m, LANE), idx_map),
            ],
            out_specs=pl.BlockSpec((8, LANE), lambda c, i: (c, 0)),
            scratch_shapes=[pltpu.VMEM((8, LANE), jnp.float32)],
        ),
        compiler_params=pltpu.CompilerParams(
            dimension_semantics=dims,
            vmem_limit_bytes=VMEM_LIMIT_BYTES),
    )


def _loss_sum_jax(p, t, alpha, beta):
    """Plain-JAX per-element loss sum (used only for the < 128-element tail)."""
    st = t * (1.0 - beta) + 0.5 * beta
    lp = jnp.log(p + EPS)
    lq = jnp.log(1.0 - p + EPS)
    bce = -(st * lp + (1.0 - st) * lq)
    w = jnp.where(t > 0.5, alpha, 1.0)
    kl = p * (lp - jnp.log(st + EPS)) + (1.0 - p) * (lq - jnp.log(1.0 - st + EPS))
    return jnp.sum(w * bce + 0.1 * kl)


def weather_loss(pred, target, alpha=2.0, beta=1.0):
    """Pallas TPU implementation of WeatherLoss.forward. Returns a scalar f32."""
    assert pred.shape == target.shape
    n = int(pred.size)
    assert n > 0

    pred_f = pred.reshape(-1)
    tgt_f = target.reshape(-1)

    m = n // LANE                 # full lane-dense rows
    n_main = m * LANE
    tail = n - n_main             # < 128 leftover elements (plain JAX)

    total = jnp.float32(0.0)

    if m > 0:
        pred_main = pred_f if tail == 0 else pred_f[:n_main]
        tgt_main = tgt_f if tail == 0 else tgt_f[:n_main]
        pred2d = pred_main.reshape(m, LANE)
        tgt2d = tgt_main.reshape(m, LANE)

        if m < 8:
            tile_m = 8                                  # single partial block
        else:
            tile_m = min(MAX_TILE_M, (m // 8) * 8)      # (8,128)-aligned, <= m
        total_tiles = -(-m // tile_m)

        num_parts = 2 if (_num_tensorcores() == 2 and total_tiles >= 2) else 1
        try:
            out = _build_call(m, tile_m, num_parts, alpha, beta)(pred2d, tgt2d)
        except Exception:
            if num_parts == 1:
                raise
            # CORE_PARALLEL unavailable -> safe single-part fallback.
            out = _build_call(m, tile_m, 1, alpha, beta)(pred2d, tgt2d)

        total = total + jnp.sum(out)

    if tail:
        total = total + _loss_sum_jax(pred_f[n_main:].astype(jnp.float32),
                                      tgt_f[n_main:].astype(jnp.float32),
                                      alpha, beta)

    return total / n


def weather_loss_ref(pred, target, alpha=2.0, beta=1.0):
    """Pure-JAX reference, mirrors the PyTorch forward exactly."""
    st = target * (1.0 - beta) + 0.5 * beta
    bce = -(st * jnp.log(pred + EPS) + (1.0 - st) * jnp.log(1.0 - pred + EPS))
    w = jnp.where(target > 0.5, alpha, 1.0)
    wbce = w * bce
    kl = pred * jnp.log(pred / (st + EPS) + EPS) \
        + (1.0 - pred) * jnp.log((1.0 - pred) / (1.0 - st + EPS) + EPS)
    return wbce.mean() + 0.1 * kl.mean()


if __name__ == "__main__":
    key = jax.random.PRNGKey(0)
    k1, k2, k3, k4 = jax.random.split(key, 4)

    # NCHW, like the PyTorch call site.
    B, C, H, W = 2, 4, 16, 16
    pred = jax.nn.sigmoid(jax.random.normal(k1, (B, C, H, W), dtype=jnp.float32))
    target = jax.random.uniform(k2, (B, C, H, W), dtype=jnp.float32)

    loss = jax.block_until_ready(weather_loss(pred, target, alpha=2.0, beta=1.0))
    ref = jax.block_until_ready(weather_loss_ref(pred, target, alpha=2.0, beta=1.0))
    assert jnp.allclose(loss, ref, rtol=1e-5, atol=1e-5), (loss, ref)

    # Ragged size: exercises the partial edge tile + plain-JAX tail path (no big pad).
    shape2 = (3, 5, 7, 11)   # 1155 elements = 9 full lane rows + 3-element tail
    pred2 = jax.nn.sigmoid(jax.random.normal(k3, shape2, dtype=jnp.float32))
    target2 = jax.random.uniform(k4, shape2, dtype=jnp.float32)
    loss2 = jax.block_until_ready(weather_loss(pred2, target2, alpha=2.0, beta=0.7))
    ref2 = jax.block_until_ready(weather_loss_ref(pred2, target2, alpha=2.0, beta=0.7))
    assert jnp.allclose(loss2, ref2, rtol=1e-5, atol=1e-5), (loss2, ref2)

    print("KERNEL_OK")
</pallas_src>

<mosaic_0001>
module attributes {stable_mosaic.version = 11 : i64} {
  func.func @kernel(%arg0: i32, %arg1: i32, %arg2: memref<16x128xf32, #tpu.memory_space<vmem>>, %arg3: memref<16x128xf32, #tpu.memory_space<vmem>>, %arg4: memref<8x128xf32, #tpu.memory_space<vmem>>, %arg5: memref<8x128xf32, #tpu.memory_space<vmem>>) attributes {dimension_semantics = [#tpu.dimension_semantics<arbitrary>, #tpu.dimension_semantics<arbitrary>], iteration_bounds = array<i64: 1, 1>, scalar_prefetch = 0 : i64, scratch_operands = 1 : i64, tpu.core_type = #tpu.core_type<tc>, window_params = [{transform_indices = @transform_0, window_bounds = array<i64: 16, 128>}, {transform_indices = @transform_1, window_bounds = array<i64: 16, 128>}, {transform_indices = @transform_2, window_bounds = array<i64: 8, 128>}]} {
    %c0_i32 = arith.constant 0 : i32
    %0 = arith.cmpi eq, %arg1, %c0_i32 : i32
    %1 = arith.extui %0 : i1 to i32
    %c0_i32_0 = arith.constant 0 : i32
    %2 = arith.cmpi ne, %1, %c0_i32_0 : i32
    scf.if %2 {
      %cst_19 = arith.constant 0.000000e+00 : f32
      %45 = vector.broadcast %cst_19 : f32 to vector<8x128xf32>
      %c0_20 = arith.constant 0 : index
      %c0_21 = arith.constant 0 : index
      %46 = vector.load %arg5[%c0_20, %c0_21] : memref<8x128xf32, #tpu.memory_space<vmem>>, vector<8x128xf32>
      tpu.vector_store %arg5[%c0_20, %c0_21], %45 {strides = array<i32>} : memref<8x128xf32, #tpu.memory_space<vmem>>, vector<8x128xf32>,
    } else {
    }
    %c0 = arith.constant 0 : index
    %c0_1 = arith.constant 0 : index
    %3 = vector.load %arg2[%c0, %c0_1] : memref<16x128xf32, #tpu.memory_space<vmem>>, vector<16x128xf32>
    %c0_2 = arith.constant 0 : index
    %c0_3 = arith.constant 0 : index
    %4 = vector.load %arg3[%c0_2, %c0_3] : memref<16x128xf32, #tpu.memory_space<vmem>>, vector<16x128xf32>
    %cst = arith.constant 1.000000e-07 : f32
    %5 = vector.broadcast %cst : f32 to vector<16x128xf32>
    %6 = arith.addf %3, %5 : vector<16x128xf32>
    %7 = math.log %6 : vector<16x128xf32>
    %cst_4 = arith.constant 1.000000e+00 : f32
    %8 = vector.broadcast %cst_4 : f32 to vector<16x128xf32>
    %9 = arith.subf %8, %3 : vector<16x128xf32>
    %cst_5 = arith.constant 1.000000e-07 : f32
    %10 = vector.broadcast %cst_5 : f32 to vector<16x128xf32>
    %11 = arith.addf %9, %10 : vector<16x128xf32>
    %12 = math.log %11 : vector<16x128xf32>
    %cst_6 = arith.constant 5.000000e-01 : f32
    %13 = vector.broadcast %cst_6 : f32 to vector<16x128xf32>
    %14 = arith.cmpf ogt, %4, %13 : vector<16x128xf32>
    %cst_7 = arith.constant 2.000000e+00 : f32
    %cst_8 = arith.constant 1.000000e+00 : f32
    %15 = vector.broadcast %cst_7 : f32 to vector<16x128xf32>
    %16 = vector.broadcast %cst_8 : f32 to vector<16x128xf32>
    %17 = arith.select %14, %15, %16 : vector<16x128xi1>, vector<16x128xf32>
    %18 = arith.addf %7, %12 : vector<16x128xf32>
    %cst_9 = arith.constant -5.000000e-01 : f32
    %19 = vector.broadcast %cst_9 : f32 to vector<16x128xf32>
    %20 = arith.mulf %19, %18 : vector<16x128xf32>
    %21 = arith.mulf %3, %7 : vector<16x128xf32>
    %cst_10 = arith.constant 1.000000e+00 : f32
    %22 = vector.broadcast %cst_10 : f32 to vector<16x128xf32>
    %23 = arith.subf %22, %3 : vector<16x128xf32>
    %24 = arith.mulf %23, %12 : vector<16x128xf32>
    %25 = arith.addf %21, %24 : vector<16x128xf32>
    %cst_11 = arith.constant -6.931470e-01 : f32
    %26 = vector.broadcast %cst_11 : f32 to vector<16x128xf32>
    %27 = arith.subf %25, %26 : vector<16x128xf32>
    %28 = arith.mulf %17, %20 : vector<16x128xf32>
    %cst_12 = arith.constant 1.000000e-01 : f32
    %29 = vector.broadcast %cst_12 : f32 to vector<16x128xf32>
    %30 = arith.mulf %29, %27 : vector<16x128xf32>
    %31 = arith.addf %28, %30 : vector<16x128xf32>
    %c1_i32 = arith.constant 1 : i32
    %32 = arith.muli %arg0, %c1_i32 : i32
    %33 = arith.addi %32, %arg1 : i32
    %c16_i32 = arith.constant 16 : i32
    %34 = arith.muli %33, %c16_i32 : i32
    %c16_i32_13 = arith.constant 16 : i32
    %35 = arith.addi %34, %c16_i32_13 : i32
    %c16_i32_14 = arith.constant 16 : i32
    %36 = arith.cmpi sle, %35, %c16_i32_14 : i32
    %37 = arith.extui %36 : i1 to i32
    %c0_i32_15 = arith.constant 0 : i32
    %38 = arith.cmpi ne, %37, %c0_i32_15 : i32
    scf.if %38 {
      %c0_19 = arith.constant 0 : index
      %c0_20 = arith.constant 0 : index
      %45 = vector.load %arg5[%c0_19, %c0_20] : memref<8x128xf32, #tpu.memory_space<vmem>>, vector<8x128xf32>
      %46 = vector.shape_cast %31 : vector<16x128xf32> to vector<2x8x128xf32>
      %cst_21 = arith.constant dense<0.000000e+00> : vector<8x128xf32>
      %47 = vector.multi_reduction <add>, %46, %cst_21 [0] : vector<2x8x128xf32> to vector<8x128xf32>
      %48 = arith.addf %45, %47 : vector<8x128xf32>
      %c0_22 = arith.constant 0 : index
      %c0_23 = arith.constant 0 : index
      %49 = vector.load %arg5[%c0_22, %c0_23] : memref<8x128xf32, #tpu.memory_space<vmem>>, vector<8x128xf32>
      tpu.vector_store %arg5[%c0_22, %c0_23], %48 {strides = array<i32>} : memref<8x128xf32, #tpu.memory_space<vmem>>, vector<8x128xf32>,
    } else {
    }
    %true = arith.constant true
    %39 = arith.xori %36, %true : i1
    %40 = arith.extui %39 : i1 to i32
    %c0_i32_16 = arith.constant 0 : i32
    %41 = arith.cmpi ne, %40, %c0_i32_16 : i32
    scf.if %41 {
      %45 = tpu.iota {dimensions = array<i32: 0>} : vector<16x128xi32>
      %46 = vector.broadcast %34 : i32 to vector<16x128xi32>
      %47 = arith.addi %46, %45 : vector<16x128xi32>
      %c16_i32_19 = arith.constant 16 : i32
      %48 = vector.broadcast %c16_i32_19 : i32 to vector<16x128xi32>
      %49 = arith.cmpi slt, %47, %48 : vector<16x128xi32>
      %cst_20 = arith.constant 0.000000e+00 : f32
      %50 = vector.broadcast %cst_20 : f32 to vector<16x128xf32>
      %51 = arith.select %49, %31, %50 : vector<16x128xi1>, vector<16x128xf32>
      %c0_21 = arith.constant 0 : index
      %c0_22 = arith.constant 0 : index
      %52 = vector.load %arg5[%c0_21, %c0_22] : memref<8x128xf32, #tpu.memory_space<vmem>>, vector<8x128xf32>
      %53 = vector.shape_cast %51 : vector<16x128xf32> to vector<2x8x128xf32>
      %cst_23 = arith.constant dense<0.000000e+00> : vector<8x128xf32>
      %54 = vector.multi_reduction <add>, %53, %cst_23 [0] : vector<2x8x128xf32> to vector<8x128xf32>
      %55 = arith.addf %52, %54 : vector<8x128xf32>
      %c0_24 = arith.constant 0 : index
      %c0_25 = arith.constant 0 : index
      %56 = vector.load %arg5[%c0_24, %c0_25] : memref<8x128xf32, #tpu.memory_space<vmem>>, vector<8x128xf32>
      tpu.vector_store %arg5[%c0_24, %c0_25], %55 {strides = array<i32>} : memref<8x128xf32, #tpu.memory_space<vmem>>, vector<8x128xf32>,
    } else {
    }
    %c0_i32_17 = arith.constant 0 : i32
    %42 = arith.cmpi eq, %arg1, %c0_i32_17 : i32
    %43 = arith.extui %42 : i1 to i32
    %c0_i32_18 = arith.constant 0 : i32
    %44 = arith.cmpi ne, %43, %c0_i32_18 : i32
    scf.if %44 {
      %c0_19 = arith.constant 0 : index
      %c0_20 = arith.constant 0 : index
      %45 = vector.load %arg5[%c0_19, %c0_20] : memref<8x128xf32, #tpu.memory_space<vmem>>, vector<8x128xf32>
      %cst_21 = arith.constant dense<0.000000e+00> : vector<128xf32>
      %46 = vector.multi_reduction <add>, %45, %cst_21 [0] : vector<8x128xf32> to vector<128xf32>
      %47 = vector.shape_cast %46 : vector<128xf32> to vector<1x128xf32>
      %48 = tpu.iota {dimensions = array<i32: 0>} : vector<8x128xi32>
      %c0_i32_22 = arith.constant 0 : i32
      %49 = vector.broadcast %c0_i32_22 : i32 to vector<8x128xi32>
      %50 = arith.cmpi eq, %48, %49 : vector<8x128xi32>
      %cst_23 = arith.constant 0.000000e+00 : f32
      %51 = vector.shape_cast %47 : vector<1x128xf32> to vector<1x128xf32>
      %52 = vector.broadcast %51 : vector<1x128xf32> to vector<8x128xf32>
      %53 = vector.broadcast %cst_23 : f32 to vector<8x128xf32>
      %54 = arith.select %50, %52, %53 : vector<8x128xi1>, vector<8x128xf32>
      %c0_24 = arith.constant 0 : index
      %c0_25 = arith.constant 0 : index
      %55 = vector.load %arg4[%c0_24, %c0_25] : memref<8x128xf32, #tpu.memory_space<vmem>>, vector<8x128xf32>
      tpu.vector_store %arg4[%c0_24, %c0_25], %54 {strides = array<i32>} : memref<8x128xf32, #tpu.memory_space<vmem>>, vector<8x128xf32>,
    } else {
    }
    return
  }
  func.func @transform_0(%arg0: i32, %arg1: i32) -> (i32, i32) {
    %c1_i32 = arith.constant 1 : i32
    %0 = arith.muli %arg0, %c1_i32 : i32
    %1 = arith.addi %0, %arg1 : i32
    %c0_i32 = arith.constant 0 : i32
    %c0_i32_0 = arith.constant 0 : i32
    return %1, %c0_i32 : i32, i32
  }
  func.func @transform_1(%arg0: i32, %arg1: i32) -> (i32, i32) {
    %c1_i32 = arith.constant 1 : i32
    %0 = arith.muli %arg0, %c1_i32 : i32
    %1 = arith.addi %0, %arg1 : i32
    %c0_i32 = arith.constant 0 : i32
    %c0_i32_0 = arith.constant 0 : i32
    return %1, %c0_i32 : i32, i32
  }
  func.func @transform_2(%arg0: i32, %arg1: i32) -> (i32, i32) {
    %c0_i32 = arith.constant 0 : i32
    %c0_i32_0 = arith.constant 0 : i32
    return %arg0, %c0_i32 : i32, i32
  }
}

</mosaic_0001>

<llo_original>
// kernel: tpu_custom_call.1
$region0: #{tpu_custom_call.1}
  #allocation0 [shape = 'u32[]', space=smem, size = 0x4, offset = 0x4, fixed_abs, tag = 'smem constant byte address 0x4 - core index']
  #allocation1 [shape = 'u32[144,128]{1,0:T(1,128)}', space=vmem, size = 0x12000, scoped, tag = 'internal scratch']
  #allocation2 [shape = 'f32[8,128]{1,0:T(8,128)}', space=vmem, size = 0x1000, scoped, tag = 'scratch operand']
  %s0 = inlined_call_operand.hbm [shape: f32[16,128], index: 0, kind: input, shape index: {}]
  %s1 = inlined_call_operand.hbm [shape: f32[16,128], index: 1, kind: input, shape index: {}]
  %s2 = inlined_call_operand.hbm [shape: f32[8,128], index: 2, kind: output, shape index: {}]
  %s3 = sld [smem:[#allocation0]]
  $region42: #{tpu_custom_call.1} parent=0
    _
  %s5 = ssub.s32 1, %s3
  %s6 = scalar_select 0, %s5, %s3
  $region1: #{tpu_custom_call.1} parent=0
    #allocation3 [shape = 'u8[8192]{0}', space=vmem, size = 0x2000, scoped, tag = 'input window, operand 0, single buffered']
    #allocation4 [shape = 's32[1]{0}', space=sflag, size = 0x4, scoped, tag = 'scoped memory for tpu_custom_call.1']
    #allocation5 [shape = 's32[1]{0}', space=sflag, size = 0x4, scoped, tag = 'scoped memory for tpu_custom_call.1']
    #allocation6 [shape = 'u8[8192]{0}', space=vmem, size = 0x2000, scoped, tag = 'input window, operand 1, single buffered']
    #allocation7 [shape = 's32[1]{0}', space=sflag, size = 0x4, scoped, tag = 'scoped memory for tpu_custom_call.1']
    #allocation8 [shape = 'u8[4096]{0}', space=vmem, size = 0x1000, scoped, tag = 'output window, operand 0, single buffered']
    %7 = vsyncpa [#allocation4], 0
    %8 = vsyncpa [#allocation7], 0
    %9 = vsyncpa [#allocation5], 0
    // Predicated region
    $region2: #{tpu_custom_call.1} parent=1 // pred_check
      _
    $region3: #{tpu_custom_call.1} parent=1 // pred_check_branch
      %11 = sbr.rel (0) target = $region5
    $region4: #{tpu_custom_call.1} parent=1 // pred_region
      %s12 = sadd.s32 0, 0
      %s13 = smul.u32 2, %s12
      %s15 = ssub.s32 256, 256
      %16 = vsyncadd [#allocation4], %s15
      %s17 = smul.addr %s13, 128
      %s18 = scalar_lea.hbm %s0, %s17
      %s19 = sshll.u32 [#allocation3], 4
      %s20 = int_to_ptr.vmem [resolvable:$true] %s19
      %25 = dma.hbm_to_vmem [thread:$0]  %s18, 256, %s20, [#allocation4], 128, 128, 8
    $region5: #{tpu_custom_call.1} parent=1 // pred_fallthru
      _
    // Predicated region
    $region6: #{tpu_custom_call.1} parent=1 // pred_check
      _
    $region7: #{tpu_custom_call.1} parent=1 // pred_check_branch
      %27 = sbr.rel (0) target = $region9
    $region8: #{tpu_custom_call.1} parent=1 // pred_region
      %s28 = sadd.s32 0, 0
      %s29 = smul.u32 2, %s28
      %s31 = ssub.s32 256, 256
      %32 = vsyncadd [#allocation7], %s31
      %s33 = smul.addr %s29, 128
      %s34 = scalar_lea.hbm %s1, %s33
      %s35 = sshll.u32 [#allocation6], 4
      %s36 = int_to_ptr.vmem [resolvable:$true] %s35
      %41 = dma.hbm_to_vmem [thread:$0]  %s34, 256, %s36, [#allocation7], 128, 128, 8
    $region9: #{tpu_custom_call.1} parent=1 // pred_fallthru
      _
    // Predicated region
    $region10: #{tpu_custom_call.1} parent=1 // pred_check
      _
    $region11: #{tpu_custom_call.1} parent=1 // pred_check_branch
      %43 = sbr.rel (0) target = $region13
    $region12: #{tpu_custom_call.1} parent=1 // pred_region
      %44 = dma.done [#allocation4], 256
    $region13: #{tpu_custom_call.1} parent=1 // pred_fallthru
      _
    // Predicated region
    $region14: #{tpu_custom_call.1} parent=1 // pred_check
      _
    $region15: #{tpu_custom_call.1} parent=1 // pred_check_branch
      %46 = sbr.rel (0) target = $region17
    $region16: #{tpu_custom_call.1} parent=1 // pred_region
      %47 = dma.done [#allocation7], 256
    $region17: #{tpu_custom_call.1} parent=1 // pred_fallthru
      _
    %s48 = sadd.s32 0, 0
    %s49 = smul.u32 2, %s48
    %s50 = sadd.s32 0, 0
    %s51 = smul.u32 2, %s50
    %p52 = scmp.eq.s32.totalorder 0, 0
    // Predicated region
    $region18: #{tpu_custom_call.1} parent=1 // pred_check
      %p53 = pneg %p52
    $region19: #{tpu_custom_call.1} parent=1 // pred_check_branch
      %55 = sbr.rel (%p53) target = $region21
    $region20: #{tpu_custom_call.1} parent=1 // pred_region
      %56 = vst [vmem:[#allocation2] sm:$0xff] 0.0
    $region21: #{tpu_custom_call.1} parent=1 // pred_fallthru
      _
    %v57 = vld [vmem:[#allocation3] sm:$0xff]
    %v58 = vld [vmem:[#allocation3 + $0x8] sm:$0xff]
    %v59 = vld [vmem:[#allocation6] sm:$0xff]
    %v60 = vld [vmem:[#allocation6 + $0x8] sm:$0xff]
    %v61 = vadd.f32 %v57, 1e-07
    %v62 = vadd.f32 %v58, 1e-07
    %v63 = vlog2.pop %v61
    %v64 = vmul.f32 %v63, 0.6931472
    %v65 = vlog2.pop %v62
    %v66 = vmul.f32 %v65, 0.6931472
    %v67 = vsub.f32 1.0, %v57
    %v68 = vsub.f32 1.0, %v58
    %v69 = vadd.f32 %v67, 1e-07
    %v70 = vadd.f32 %v68, 1e-07
    %v71 = vlog2.pop %v69
    %v72 = vmul.f32 %v71, 0.6931472
    %v73 = vlog2.pop %v70
    %v74 = vmul.f32 %v73, 0.6931472
    %vm75 = vcmp.gt.f32.partialorder %v59, 0.5
    %vm76 = vcmp.gt.f32.partialorder %v60, 0.5
    %v77 = vsel %vm75, 2.0, 1.0
    %v78 = vsel %vm76, 2.0, 1.0
    %v79 = vadd.f32 %v64, %v72
    %v80 = vadd.f32 %v66, %v74
    %v81 = vmul.f32 %v79, -0.5
    %v82 = vmul.f32 %v80, -0.5
    %v83 = vmul.f32 %v57, %v64
    %v84 = vmul.f32 %v58, %v66
    %v85 = vmul.f32 %v67, %v72
    %v86 = vmul.f32 %v68, %v74
    %v87 = vadd.f32 %v83, %v85
    %v88 = vadd.f32 %v84, %v86
    %v89 = vsub.f32 %v87, -0.693147
    %v90 = vsub.f32 %v88, -0.693147
    %v91 = vmul.f32 %v77, %v81
    %v92 = vmul.f32 %v78, %v82
    %v93 = vmul.f32 %v89, 0.1
    %v94 = vmul.f32 %v90, 0.1
    %v95 = vadd.f32 %v91, %v93
    %v96 = vadd.f32 %v92, %v94
    %s97 = sadd.s32 0, 0
    %s98 = smul.u32 %s97, 16
    %s99 = sadd.s32 %s98, 16
    %p100 = scmp.le.s32.totalorder %s99, 16
    // Predicated region
    $region22: #{tpu_custom_call.1} parent=1 // pred_check
      %p101 = pneg %p100
    $region23: #{tpu_custom_call.1} parent=1 // pred_check_branch
      %103 = sbr.rel (%p101) target = $region25
    $region24: #{tpu_custom_call.1} parent=1 // pred_region
      %v104 = vld [vmem:[#allocation2] sm:$0xff]
      %v105 = vadd.f32 %v95, %v96
      %v106 = vadd.f32 %v104, %v105
      %107 = vst [vmem:[#allocation2] sm:$0xff] %v106
    $region25: #{tpu_custom_call.1} parent=1 // pred_fallthru
      _
    %p108 = scmp.gt.s32.totalorder %s99, 16
    // Predicated region
    $region26: #{tpu_custom_call.1} parent=1 // pred_check
      %p109 = pneg %p108
    $region27: #{tpu_custom_call.1} parent=1 // pred_check_branch
      %111 = sbr.rel (%p109) target = $region29
    $region28: #{tpu_custom_call.1} parent=1 // pred_region
      %v112 = vlaneseq
      %v113 = vshrl.u32 %v112, 7
      %v114 = vadd.s32 %v113, 8
      %v115 = vstv %s98
      %v116 = vadd.s32 %v115, %v113
      %v117 = vadd.s32 %v115, %v114
      %vm118 = vcmp.lt.s32.totalorder %v116, 16
      %vm119 = vcmp.lt.s32.totalorder %v117, 16
      %v120 = vsel %vm118, %v95, 0.0
      %v121 = vsel %vm119, %v96, 0.0
      %v122 = vld [vmem:[#allocation2] sm:$0xff]
      %v123 = vadd.f32 %v120, %v121
      %v124 = vadd.f32 %v122, %v123
      %125 = vst [vmem:[#allocation2] sm:$0xff] %v124
    $region29: #{tpu_custom_call.1} parent=1 // pred_fallthru
      _
    // Predicated region
    $region30: #{tpu_custom_call.1} parent=1 // pred_check
      %p126 = pneg %p52
    $region31: #{tpu_custom_call.1} parent=1 // pred_check_branch
      %128 = sbr.rel (%p126) target = $region33
    $region32: #{tpu_custom_call.1} parent=1 // pred_region
      %v129 = vld [vmem:[#allocation2] sm:$0xff]
      %v130 = vrot.slane %v129, 4
      %v131 = vadd.f32 %v129, %v130
      %v132 = vrot.slane %v131, 2
      %v133 = vadd.f32 %v131, %v132
      %v134 = vrot.slane %v133, 1
      %v135 = vadd.f32 %v133, %v134
      %v136 = vlaneseq
      %v137 = vshrl.u32 %v136, 7
      %vm138 = vcmp.eq.s32.totalorder %v137, 0
      %v139 = vsel %vm138, %v135, 0.0
      %140 = vst [vmem:[#allocation8] sm:$0xff] %v139
    $region33: #{tpu_custom_call.1} parent=1 // pred_fallthru
      _
    // Predicated region
    $region34: #{tpu_custom_call.1} parent=1 // pred_check
      _
    $region35: #{tpu_custom_call.1} parent=1 // pred_check_branch
      %142 = sbr.rel (0) target = $region37
    $region36: #{tpu_custom_call.1} parent=1 // pred_region
      %s144 = ssub.s32 128, 128
      %145 = vsyncadd [#allocation5], %s144
      %s147 = sshll.u32 [#allocation8], 4
      %s148 = int_to_ptr.vmem [resolvable:$true] %s147
      %150 = dma.vmem_to_hbm [thread:$0]  %s148, 128, %s2, [#allocation5]
    $region37: #{tpu_custom_call.1} parent=1 // pred_fallthru
      _
    // Predicated region
    $region38: #{tpu_custom_call.1} parent=1 // pred_check
      _
    $region39: #{tpu_custom_call.1} parent=1 // pred_check_branch
      %152 = sbr.rel (0) target = $region41
    $region40: #{tpu_custom_call.1} parent=1 // pred_region
      %153 = dma.done [#allocation5], 128
    $region41: #{tpu_custom_call.1} parent=1 // pred_fallthru
      _
    %154 = vsyncpa [#allocation4], 1
    %155 = vsyncpa [#allocation7], 1
    %156 = vsyncpa [#allocation5], 1

</llo_original>
